<compile_context>
chip_gen: v5e
topology: v5e:2x2
jax: 0.10.0
libtpu: 0.0.40
codegen_flags: <defaults>
</compile_context>

<pallas_src>
import functools

import jax
import jax.numpy as jnp
import numpy as np
from jax.experimental import pallas as pl
from jax.experimental.pallas import tpu as pltpu

_LANES = 512            # lane width of one time-row (multiple of 128)
_EPS = 1e-10


def _cdiv(a, b):
    return -(-a // b)


def _snr_power_kernel(pred_ref, target_ref, sp_ref, np_ref, sp_acc, np_acc):
    """Accumulates per-sample signal / noise power for one time super-chunk."""
    k = pl.program_id(1)

    @pl.when(k == 0)
    def _init():
        sp_acc[...] = jnp.zeros_like(sp_acc)
        np_acc[...] = jnp.zeros_like(np_acc)

    t = target_ref[...].astype(jnp.float32)      # (B, S, L)
    p = pred_ref[...].astype(jnp.float32)        # (B, S, L)
    n = t - p
    # Collapse only the sublane axis each step; keep the lane axis resident in
    # the (B, L) accumulators so the cross-lane collapse happens only once per
    # chunk (in the finalize below).
    sp_acc[...] += jnp.sum(t * t, axis=1)        # (B, L)
    np_acc[...] += jnp.sum(n * n, axis=1)        # (B, L)

    @pl.when(k == pl.num_programs(1) - 1)
    def _finalize():
        sp_ref[0] = jnp.sum(sp_acc[...], axis=1, keepdims=True)   # (B, 1)
        np_ref[0] = jnp.sum(np_acc[...], axis=1, keepdims=True)   # (B, 1)


def _choose_tiling(B, T, elem_bytes, block_bytes):
    """Pick (L, S rows/block, P parallel chunks, steps/chunk, padded rows)."""
    L = _LANES
    R = _cdiv(T, L)                                   # time rows of L elements
    # Biggest sublane tile keeping one input block within the byte budget.
    s_max = max(8, (block_bytes // (B * L * elem_bytes)) // 8 * 8)
    # Leading "parallel" super-chunk axis (v7x dual TensorCore); only worth it
    # when there are at least two S=8 blocks of work.
    P = 2 if R >= 16 else 1
    rows_per_chunk = _cdiv(R, P)
    S = min(s_max, _cdiv(rows_per_chunk, 8) * 8)
    steps = _cdiv(rows_per_chunk, S)
    R_pad = P * steps * S
    return L, S, P, steps, R_pad


@functools.partial(jax.jit, static_argnames=("reduction", "block_bytes"))
def signal_to_noise_ratio(pred, target, reduction="mean",
                          *, block_bytes=4 * 1024 * 1024):
    """pred, target: [B, T]. Returns SNR in dB (scalar for 'mean'/'sum',
    per-sample [B] otherwise, matching the torch module's else branch)."""
    assert pred.shape == target.shape and pred.ndim == 2
    B, T = pred.shape
    elem_bytes = jnp.dtype(pred.dtype).itemsize
    L, S, P, steps, R_pad = _choose_tiling(B, T, elem_bytes, block_bytes)
    # TODO(synk): for very large B, also tile B (or shrink L) so the budgeted
    # block still fits; here B is small so blocks stay a few MiB.

    # Zero-pad T up to a whole number of (S, L) blocks: padded zeros contribute
    # exactly 0 to both power sums.
    T_pad = R_pad * L
    if T_pad != T:
        pad = ((0, 0), (0, T_pad - T))
        pred = jnp.pad(pred, pad)
        target = jnp.pad(target, pad)
    # Sublane-dense layout: [B, T_pad] -> [B, R_pad, L].
    pred3 = pred.reshape(B, R_pad, L)
    target3 = target.reshape(B, R_pad, L)

    # 2 inputs x 2 pipeline buffers x one (B, S, L) block + accumulators.
    working = 4 * B * S * L * elem_bytes + 2 * B * L * 4
    vmem_limit = int(min(48 * 1024 * 1024, working + 8 * 1024 * 1024))

    in_spec = pl.BlockSpec((B, S, L), lambda p, k: (0, p * steps + k, 0))
    out_spec = pl.BlockSpec((1, B, 1), lambda p, k: (p, 0, 0))

    sp_chunks, np_chunks = pl.pallas_call(
        _snr_power_kernel,
        out_shape=(jax.ShapeDtypeStruct((P, B, 1), jnp.float32),
                   jax.ShapeDtypeStruct((P, B, 1), jnp.float32)),
        grid_spec=pltpu.PrefetchScalarGridSpec(
            num_scalar_prefetch=0,
            grid=(P, steps),
            in_specs=[in_spec, in_spec],
            out_specs=[out_spec, out_spec],
            scratch_shapes=[pltpu.VMEM((B, L), jnp.float32),
                            pltpu.VMEM((B, L), jnp.float32)],
        ),
        compiler_params=pltpu.CompilerParams(
            dimension_semantics=("parallel", "arbitrary"),
            vmem_limit_bytes=vmem_limit),
    )(pred3, target3)

    # Tiny JAX epilogue: combine chunk partials, then log10 + reduction.
    sp = jnp.sum(sp_chunks, axis=0)[:, 0]        # (B,)
    npw = jnp.sum(np_chunks, axis=0)[:, 0]       # (B,)
    snr = 10.0 * jnp.log10(sp / (npw + jnp.float32(_EPS)))
    if reduction == "mean":
        return jnp.mean(snr)
    elif reduction == "sum":
        return jnp.sum(snr)
    return snr                                    # 'none' / anything else


def _snr_ref(pred, target, reduction="mean"):
    t = target.astype(jnp.float32)
    p = pred.astype(jnp.float32)
    sp = jnp.sum(t * t, axis=1)
    npw = jnp.sum((t - p) ** 2, axis=1)
    snr = 10.0 * jnp.log10(sp / (npw + _EPS))
    if reduction == "mean":
        return jnp.mean(snr)
    if reduction == "sum":
        return jnp.sum(snr)
    return snr


if __name__ == "__main__":
    key = jax.random.PRNGKey(0)

    # Case 1: B=2, T=4096, 'mean'.
    k1, k2, key = jax.random.split(key, 3)
    target = jax.random.normal(k1, (2, 4096), dtype=jnp.float32)
    pred = target + 0.1 * jax.random.normal(k2, (2, 4096), dtype=jnp.float32)
    got = jax.block_until_ready(signal_to_noise_ratio(pred, target, "mean"))
    ref = _snr_ref(pred, target, "mean")
    np.testing.assert_allclose(np.array(got), np.array(ref), rtol=1e-3, atol=1e-3)

    # Case 2: ragged T (zero-padded internally), 'sum'.
    k3, k4, key = jax.random.split(key, 3)
    target2 = jax.random.normal(k3, (3, 250), dtype=jnp.float32)
    pred2 = target2 + 0.25 * jax.random.normal(k4, (3, 250), dtype=jnp.float32)
    got2 = jax.block_until_ready(signal_to_noise_ratio(pred2, target2, "sum"))
    ref2 = _snr_ref(pred2, target2, "sum")
    np.testing.assert_allclose(np.array(got2), np.array(ref2), rtol=1e-3, atol=1e-3)

    # Case 3: exercises the parallel chunk axis (P=2) and multi-step
    # accumulation via a small block budget; 'none' returns per-sample SNR.
    k5, k6, key = jax.random.split(key, 3)
    target3 = jax.random.normal(k5, (2, 16384), dtype=jnp.float32)
    pred3 = target3 + 0.05 * jax.random.normal(k6, (2, 16384), dtype=jnp.float32)
    got3 = jax.block_until_ready(
        signal_to_noise_ratio(pred3, target3, "none", block_bytes=32 * 1024))
    ref3 = _snr_ref(pred3, target3, "none")
    np.testing.assert_allclose(np.array(got3), np.array(ref3), rtol=1e-3, atol=1e-3)

    print("KERNEL_OK")
</pallas_src>

<mosaic_0001>
module attributes {stable_mosaic.version = 11 : i64} {
  func.func @_snr_power_kernel(%arg0: i32, %arg1: i32, %arg2: memref<2x8x512xf32, #tpu.memory_space<vmem>>, %arg3: memref<2x8x512xf32, #tpu.memory_space<vmem>>, %arg4: memref<1x2x1xf32, #tpu.memory_space<vmem>>, %arg5: memref<1x2x1xf32, #tpu.memory_space<vmem>>, %arg6: memref<2x512xf32, #tpu.memory_space<vmem>>, %arg7: memref<2x512xf32, #tpu.memory_space<vmem>>) attributes {dimension_semantics = [#tpu.dimension_semantics<parallel>, #tpu.dimension_semantics<arbitrary>], iteration_bounds = array<i64: 1, 1>, scalar_prefetch = 0 : i64, scratch_operands = 2 : i64, tpu.core_type = #tpu.core_type<tc>, window_params = [{transform_indices = @transform_0, window_bounds = array<i64: 2, 8, 512>}, {transform_indices = @transform_1, window_bounds = array<i64: 2, 8, 512>}, {transform_indices = @transform_2, window_bounds = array<i64: 1, 2, 1>}, {transform_indices = @transform_3, window_bounds = array<i64: 1, 2, 1>}]} {
    %c0_i32 = arith.constant 0 : i32
    %0 = arith.cmpi eq, %arg1, %c0_i32 : i32
    %1 = arith.extui %0 : i1 to i32
    %c0_i32_0 = arith.constant 0 : i32
    %2 = arith.cmpi ne, %1, %c0_i32_0 : i32
    scf.if %2 {
      %cst_17 = arith.constant 0.000000e+00 : f32
      %19 = vector.broadcast %cst_17 : f32 to vector<2x512xf32>
      %c0_18 = arith.constant 0 : index
      %c0_19 = arith.constant 0 : index
      %20 = vector.load %arg6[%c0_18, %c0_19] : memref<2x512xf32, #tpu.memory_space<vmem>>, vector<2x512xf32>
      tpu.vector_store %arg6[%c0_18, %c0_19], %19 {strides = array<i32>} : memref<2x512xf32, #tpu.memory_space<vmem>>, vector<2x512xf32>,
      %cst_20 = arith.constant 0.000000e+00 : f32
      %21 = vector.broadcast %cst_20 : f32 to vector<2x512xf32>
      %c0_21 = arith.constant 0 : index
      %c0_22 = arith.constant 0 : index
      %22 = vector.load %arg7[%c0_21, %c0_22] : memref<2x512xf32, #tpu.memory_space<vmem>>, vector<2x512xf32>
      tpu.vector_store %arg7[%c0_21, %c0_22], %21 {strides = array<i32>} : memref<2x512xf32, #tpu.memory_space<vmem>>, vector<2x512xf32>,
    } else {
    }
    %c0 = arith.constant 0 : index
    %c0_1 = arith.constant 0 : index
    %c0_2 = arith.constant 0 : index
    %3 = vector.load %arg3[%c0, %c0_1, %c0_2] : memref<2x8x512xf32, #tpu.memory_space<vmem>>, vector<2x8x512xf32>
    %c0_3 = arith.constant 0 : index
    %c0_4 = arith.constant 0 : index
    %c0_5 = arith.constant 0 : index
    %4 = vector.load %arg2[%c0_3, %c0_4, %c0_5] : memref<2x8x512xf32, #tpu.memory_space<vmem>>, vector<2x8x512xf32>
    %5 = arith.subf %3, %4 : vector<2x8x512xf32>
    %c0_6 = arith.constant 0 : index
    %c0_7 = arith.constant 0 : index
    %6 = vector.load %arg6[%c0_6, %c0_7] : memref<2x512xf32, #tpu.memory_space<vmem>>, vector<2x512xf32>
    %7 = arith.mulf %3, %3 : vector<2x8x512xf32>
    %cst = arith.constant dense<0.000000e+00> : vector<2x512xf32>
    %8 = vector.multi_reduction <add>, %7, %cst [1] : vector<2x8x512xf32> to vector<2x512xf32>
    %9 = arith.addf %6, %8 : vector<2x512xf32>
    %c0_8 = arith.constant 0 : index
    %c0_9 = arith.constant 0 : index
    %10 = vector.load %arg6[%c0_8, %c0_9] : memref<2x512xf32, #tpu.memory_space<vmem>>, vector<2x512xf32>
    tpu.vector_store %arg6[%c0_8, %c0_9], %9 {strides = array<i32>} : memref<2x512xf32, #tpu.memory_space<vmem>>, vector<2x512xf32>,
    %c0_10 = arith.constant 0 : index
    %c0_11 = arith.constant 0 : index
    %11 = vector.load %arg7[%c0_10, %c0_11] : memref<2x512xf32, #tpu.memory_space<vmem>>, vector<2x512xf32>
    %12 = arith.mulf %5, %5 : vector<2x8x512xf32>
    %cst_12 = arith.constant dense<0.000000e+00> : vector<2x512xf32>
    %13 = vector.multi_reduction <add>, %12, %cst_12 [1] : vector<2x8x512xf32> to vector<2x512xf32>
    %14 = arith.addf %11, %13 : vector<2x512xf32>
    %c0_13 = arith.constant 0 : index
    %c0_14 = arith.constant 0 : index
    %15 = vector.load %arg7[%c0_13, %c0_14] : memref<2x512xf32, #tpu.memory_space<vmem>>, vector<2x512xf32>
    tpu.vector_store %arg7[%c0_13, %c0_14], %14 {strides = array<i32>} : memref<2x512xf32, #tpu.memory_space<vmem>>, vector<2x512xf32>,
    %c0_i32_15 = arith.constant 0 : i32
    %16 = arith.cmpi eq, %arg1, %c0_i32_15 : i32
    %17 = arith.extui %16 : i1 to i32
    %c0_i32_16 = arith.constant 0 : i32
    %18 = arith.cmpi ne, %17, %c0_i32_16 : i32
    scf.if %18 {
      %c0_17 = arith.constant 0 : index
      %c0_18 = arith.constant 0 : index
      %19 = vector.load %arg6[%c0_17, %c0_18] : memref<2x512xf32, #tpu.memory_space<vmem>>, vector<2x512xf32>
      %cst_19 = arith.constant dense<0.000000e+00> : vector<2xf32>
      %20 = vector.multi_reduction <add>, %19, %cst_19 [1] : vector<2x512xf32> to vector<2xf32>
      %21 = vector.shape_cast %20 : vector<2xf32> to vector<2x1xf32>
      %c0_20 = arith.constant 0 : index
      %c0_21 = arith.constant 0 : index
      %c0_22 = arith.constant 0 : index
      %22 = vector.load %arg4[%c0_20, %c0_21, %c0_22] : memref<1x2x1xf32, #tpu.memory_space<vmem>>, vector<1x2x1xf32>
      %23 = vector.shape_cast %22 : vector<1x2x1xf32> to vector<2x1xf32>
      %24 = vector.shape_cast %21 : vector<2x1xf32> to vector<1x2x1xf32>
      tpu.vector_store %arg4[%c0_20, %c0_21, %c0_22], %24 {strides = array<i32>} : memref<1x2x1xf32, #tpu.memory_space<vmem>>, vector<1x2x1xf32>,
      %c0_23 = arith.constant 0 : index
      %c0_24 = arith.constant 0 : index
      %25 = vector.load %arg7[%c0_23, %c0_24] : memref<2x512xf32, #tpu.memory_space<vmem>>, vector<2x512xf32>
      %cst_25 = arith.constant dense<0.000000e+00> : vector<2xf32>
      %26 = vector.multi_reduction <add>, %25, %cst_25 [1] : vector<2x512xf32> to vector<2xf32>
      %27 = vector.shape_cast %26 : vector<2xf32> to vector<2x1xf32>
      %c0_26 = arith.constant 0 : index
      %c0_27 = arith.constant 0 : index
      %c0_28 = arith.constant 0 : index
      %28 = vector.load %arg5[%c0_26, %c0_27, %c0_28] : memref<1x2x1xf32, #tpu.memory_space<vmem>>, vector<1x2x1xf32>
      %29 = vector.shape_cast %28 : vector<1x2x1xf32> to vector<2x1xf32>
      %30 = vector.shape_cast %27 : vector<2x1xf32> to vector<1x2x1xf32>
      tpu.vector_store %arg5[%c0_26, %c0_27, %c0_28], %30 {strides = array<i32>} : memref<1x2x1xf32, #tpu.memory_space<vmem>>, vector<1x2x1xf32>,
    } else {
    }
    return
  }
  func.func @transform_0(%arg0: i32, %arg1: i32) -> (i32, i32, i32) {
    %c1_i32 = arith.constant 1 : i32
    %0 = arith.muli %arg0, %c1_i32 : i32
    %1 = arith.addi %0, %arg1 : i32
    %c0_i32 = arith.constant 0 : i32
    %c0_i32_0 = arith.constant 0 : i32
    %c0_i32_1 = arith.constant 0 : i32
    return %c0_i32, %1, %c0_i32_0 : i32, i32, i32
  }
  func.func @transform_1(%arg0: i32, %arg1: i32) -> (i32, i32, i32) {
    %c1_i32 = arith.constant 1 : i32
    %0 = arith.muli %arg0, %c1_i32 : i32
    %1 = arith.addi %0, %arg1 : i32
    %c0_i32 = arith.constant 0 : i32
    %c0_i32_0 = arith.constant 0 : i32
    %c0_i32_1 = arith.constant 0 : i32
    return %c0_i32, %1, %c0_i32_0 : i32, i32, i32
  }
  func.func @transform_2(%arg0: i32, %arg1: i32) -> (i32, i32, i32) {
    %c0_i32 = arith.constant 0 : i32
    %c0_i32_0 = arith.constant 0 : i32
    %c0_i32_1 = arith.constant 0 : i32
    return %arg0, %c0_i32, %c0_i32_0 : i32, i32, i32
  }
  func.func @transform_3(%arg0: i32, %arg1: i32) -> (i32, i32, i32) {
    %c0_i32 = arith.constant 0 : i32
    %c0_i32_0 = arith.constant 0 : i32
    %c0_i32_1 = arith.constant 0 : i32
    return %arg0, %c0_i32, %c0_i32_0 : i32, i32, i32
  }
}

</mosaic_0001>

<llo_original>
// kernel: signal_to_noise_ratio.1
$region0: #{signal_to_noise_ratio.1}
  #allocation0 [shape = 'u32[]', space=smem, size = 0x4, offset = 0x4, fixed_abs, tag = 'smem constant byte address 0x4 - core index']
  #allocation1 [shape = 'u32[72,128]{1,0:T(1,128)}', space=vmem, size = 0x9000, scoped, tag = 'internal scratch']
  #allocation2 [shape = 'f32[2,512]{1,0:T(2,128)}', space=vmem, size = 0x1000, scoped, tag = 'scratch operand']
  #allocation3 [shape = 'f32[2,512]{1,0:T(2,128)}', space=vmem, size = 0x1000, scoped, tag = 'scratch operand']
  %s0 = inlined_call_operand.vmem [shape: f32[2,8,512], index: 0, kind: input, shape index: {}]
  %s1 = inlined_call_operand.vmem [shape: f32[2,8,512], index: 1, kind: input, shape index: {}]
  %s2 = inlined_call_operand.vmem [shape: f32[1,2,1], index: 2, kind: output, shape index: {0}]
  %s3 = inlined_call_operand.vmem [shape: f32[1,2,1], index: 3, kind: output, shape index: {1}]
  %4 = xla_tuple %s2, %s3
  %s5 = sld [smem:[#allocation0]]
  $region34: #{signal_to_noise_ratio.1} parent=0
    _
  %s7 = ssub.s32 1, %s5
  %s8 = scalar_select 0, %s7, %s5
  // Predicated region
  $region2: #{signal_to_noise_ratio.1} parent=0 // pred_check
    _
  $region3: #{signal_to_noise_ratio.1} parent=0 // pred_check_branch
    %10 = sbr.rel (0) target = $region5
  $region4: #{signal_to_noise_ratio.1} parent=0 // pred_region
    %s11 = sadd.s32 0, 0
    %p12 = scmp.lt.s32.totalorder %s11, 0
    %s13 = scalar_select %p12, %s11, 0
    %s14 = smul.addr %s13, 4
    %s15 = smul.addr %s14, 8
    %s16 = scalar_lea.vmem %s0, %s15
    %s17 = sadd.s32 0, 0
  $region5: #{signal_to_noise_ratio.1} parent=0 // pred_fallthru
    _
  // Predicated region
  $region6: #{signal_to_noise_ratio.1} parent=0 // pred_check
    _
  $region7: #{signal_to_noise_ratio.1} parent=0 // pred_check_branch
    %19 = sbr.rel (0) target = $region9
  $region8: #{signal_to_noise_ratio.1} parent=0 // pred_region
    %s20 = sadd.s32 0, 0
    %p21 = scmp.lt.s32.totalorder %s20, 0
    %s22 = scalar_select %p21, %s20, 0
    %s23 = smul.addr %s22, 4
    %s24 = smul.addr %s23, 8
    %s25 = scalar_lea.vmem %s1, %s24
    %s26 = sadd.s32 0, 0
  $region9: #{signal_to_noise_ratio.1} parent=0 // pred_fallthru
    _
  %s27 = sadd.s32 0, 0
  %p28 = scmp.lt.s32.totalorder %s27, 0
  %s29 = scalar_select %p28, %s27, 0
  %s30 = smul.addr %s29, 4
  %s31 = smul.addr %s30, 8
  %s32 = scalar_lea.vmem %s0, %s31
  %s33 = sadd.s32 0, 0
  %p34 = scmp.lt.s32.totalorder %s33, 0
  %s35 = scalar_select %p34, %s33, 0
  %s36 = smul.addr %s35, 4
  %s37 = smul.addr %s36, 8
  %s38 = scalar_lea.vmem %s1, %s37
  %s39 = sadd.s32 0, 0
  %p40 = scmp.lt.s32.totalorder %s39, 0
  %s41 = scalar_select %p40, %s39, 0
  %s42 = smul.addr %s41, 4
  %s43 = smul.addr %s42, 8
  %s44 = scalar_lea.vmem %s0, %s43
  %s45 = sadd.s32 0, 0
  %s46 = sadd.s32 0, 0
  %p47 = scmp.lt.s32.totalorder %s46, 0
  %s48 = scalar_select %p47, %s46, 0
  %s49 = smul.addr %s48, 4
  %s50 = smul.addr %s49, 8
  %s51 = scalar_lea.vmem %s1, %s50
  %s52 = sadd.s32 0, 0
  %p53 = scmp.eq.s32.totalorder 0, 0
  // Predicated region
  $region10: #{signal_to_noise_ratio.1} parent=0 // pred_check
    %p54 = pneg %p53
  $region11: #{signal_to_noise_ratio.1} parent=0 // pred_check_branch
    %56 = sbr.rel (%p54) target = $region13
  $region12: #{signal_to_noise_ratio.1} parent=0 // pred_region
    %57 = vst [vmem:[#allocation2] sm:$0xff] 0.0
    %58 = vst [vmem:[#allocation3] sm:$0xff] 0.0
  $region13: #{signal_to_noise_ratio.1} parent=0 // pred_fallthru
    _
  %v59 = vld [vmem:[%s51] sm:$0xff]
  %v60 = vld [vmem:[%s51 + $0x8] sm:$0xff]
  %v61 = vld [vmem:[%s51 + $0x10] sm:$0xff]
  %v62 = vld [vmem:[%s51 + $0x18] sm:$0xff]
  %v63 = vld [vmem:[%s51 + $0x20] sm:$0xff]
  %v64 = vld [vmem:[%s51 + $0x28] sm:$0xff]
  %v65 = vld [vmem:[%s51 + $0x30] sm:$0xff]
  %v66 = vld [vmem:[%s51 + $0x38] sm:$0xff]
  %v67 = vld [vmem:[%s44] sm:$0xff]
  %v68 = vld [vmem:[%s44 + $0x8] sm:$0xff]
  %v69 = vld [vmem:[%s44 + $0x10] sm:$0xff]
  %v70 = vld [vmem:[%s44 + $0x18] sm:$0xff]
  %v71 = vld [vmem:[%s44 + $0x20] sm:$0xff]
  %v72 = vld [vmem:[%s44 + $0x28] sm:$0xff]
  %v73 = vld [vmem:[%s44 + $0x30] sm:$0xff]
  %v74 = vld [vmem:[%s44 + $0x38] sm:$0xff]
  %v75 = vsub.f32 %v59, %v67
  %v76 = vsub.f32 %v60, %v68
  %v77 = vsub.f32 %v61, %v69
  %v78 = vsub.f32 %v62, %v70
  %v79 = vsub.f32 %v63, %v71
  %v80 = vsub.f32 %v64, %v72
  %v81 = vsub.f32 %v65, %v73
  %v82 = vsub.f32 %v66, %v74
  %v83 = vld [vmem:[#allocation2] sm:$0xff]
  %v84 = vmul.f32 %v59, %v59
  %v85 = vmul.f32 %v60, %v60
  %v86 = vmul.f32 %v61, %v61
  %v87 = vmul.f32 %v62, %v62
  %v88 = vmul.f32 %v63, %v63
  %v89 = vmul.f32 %v64, %v64
  %v90 = vmul.f32 %v65, %v65
  %v91 = vmul.f32 %v66, %v66
  %v92 = vrot.slane %v84, 4
  %v93 = vadd.f32 %v84, %v92
  %v94 = vrot.slane %v93, 2
  %v95 = vadd.f32 %v93, %v94
  %v96 = vrot.slane %v95, 1
  %v97 = vadd.f32 %v95, %v96
  %v98 = vrot.slane %v85, 4
  %v99 = vadd.f32 %v85, %v98
  %v100 = vrot.slane %v99, 2
  %v101 = vadd.f32 %v99, %v100
  %v102 = vrot.slane %v101, 1
  %v103 = vadd.f32 %v101, %v102
  %v104 = vrot.slane %v86, 4
  %v105 = vadd.f32 %v86, %v104
  %v106 = vrot.slane %v105, 2
  %v107 = vadd.f32 %v105, %v106
  %v108 = vrot.slane %v107, 1
  %v109 = vadd.f32 %v107, %v108
  %v110 = vrot.slane %v87, 4
  %v111 = vadd.f32 %v87, %v110
  %v112 = vrot.slane %v111, 2
  %v113 = vadd.f32 %v111, %v112
  %v114 = vrot.slane %v113, 1
  %v115 = vadd.f32 %v113, %v114
  %v116 = vrot.slane %v88, 4
  %v117 = vadd.f32 %v88, %v116
  %v118 = vrot.slane %v117, 2
  %v119 = vadd.f32 %v117, %v118
  %v120 = vrot.slane %v119, 1
  %v121 = vadd.f32 %v119, %v120
  %v122 = vrot.slane %v89, 4
  %v123 = vadd.f32 %v89, %v122
  %v124 = vrot.slane %v123, 2
  %v125 = vadd.f32 %v123, %v124
  %v126 = vrot.slane %v125, 1
  %v127 = vadd.f32 %v125, %v126
  %v128 = vrot.slane %v90, 4
  %v129 = vadd.f32 %v90, %v128
  %v130 = vrot.slane %v129, 2
  %v131 = vadd.f32 %v129, %v130
  %v132 = vrot.slane %v131, 1
  %v133 = vadd.f32 %v131, %v132
  %v134 = vrot.slane %v91, 4
  %v135 = vadd.f32 %v91, %v134
  %v136 = vrot.slane %v135, 2
  %v137 = vadd.f32 %v135, %v136
  %v138 = vrot.slane %v137, 1
  %v139 = vadd.f32 %v137, %v138
  %v148 = vrot.slane %v103, 6
  %v149 = vrot.slane %v109, 4
  %v150 = vrot.slane %v115, 2
  %v151 = vrot.slane %v127, 6
  %v152 = vrot.slane %v133, 4
  %v153 = vrot.slane %v139, 2
  %vm154 = vcmask 1041408
  %v155 = vsel %vm154, %v97, %v148
  %vm156 = vcmask 1045508
  %v157 = vsel %vm156, %v149, %v150
  %vm158 = vcmask 1043456
  %v159 = vsel %vm158, %v155, %v157
  %v160 = vsel %vm154, %v121, %v151
  %v161 = vsel %vm156, %v152, %v153
  %v162 = vsel %vm158, %v160, %v161
  %vm163 = vcmask 1044484
  %v164 = vsel %vm163, %v159, %v159
  %vm165 = vcmask 1046534
  %v166 = vsel %vm165, %v159, %v164
  %v167 = vrot.slane %v162, 7
  %vm168 = vcmask 1041409
  %v169 = vsel %vm168, %v167, %v166
  %vm170 = vcmask 1043459
  %v171 = vsel %vm170, %v167, %v169
  %vm172 = vcmask 1045509
  %v173 = vsel %vm172, %v167, %v171
  %vm174 = vcmask 1047559
  %v175 = vsel %vm174, %v167, %v173
  %v177 = vadd.f32 %v83, %v175
  %178 = vst [vmem:[#allocation2] sm:$0xff] %v177
  %v179 = vld [vmem:[#allocation3] sm:$0xff]
  %v180 = vmul.f32 %v75, %v75
  %v181 = vmul.f32 %v76, %v76
  %v182 = vmul.f32 %v77, %v77
  %v183 = vmul.f32 %v78, %v78
  %v184 = vmul.f32 %v79, %v79
  %v185 = vmul.f32 %v80, %v80
  %v186 = vmul.f32 %v81, %v81
  %v187 = vmul.f32 %v82, %v82
  %v188 = vrot.slane %v180, 4
  %v189 = vadd.f32 %v180, %v188
  %v190 = vrot.slane %v189, 2
  %v191 = vadd.f32 %v189, %v190
  %v192 = vrot.slane %v191, 1
  %v193 = vadd.f32 %v191, %v192
  %v194 = vrot.slane %v181, 4
  %v195 = vadd.f32 %v181, %v194
  %v196 = vrot.slane %v195, 2
  %v197 = vadd.f32 %v195, %v196
  %v198 = vrot.slane %v197, 1
  %v199 = vadd.f32 %v197, %v198
  %v200 = vrot.slane %v182, 4
  %v201 = vadd.f32 %v182, %v200
  %v202 = vrot.slane %v201, 2
  %v203 = vadd.f32 %v201, %v202
  %v204 = vrot.slane %v203, 1
  %v205 = vadd.f32 %v203, %v204
  %v206 = vrot.slane %v183, 4
  %v207 = vadd.f32 %v183, %v206
  %v208 = vrot.slane %v207, 2
  %v209 = vadd.f32 %v207, %v208
  %v210 = vrot.slane %v209, 1
  %v211 = vadd.f32 %v209, %v210
  %v212 = vrot.slane %v184, 4
  %v213 = vadd.f32 %v184, %v212
  %v214 = vrot.slane %v213, 2
  %v215 = vadd.f32 %v213, %v214
  %v216 = vrot.slane %v215, 1
  %v217 = vadd.f32 %v215, %v216
  %v218 = vrot.slane %v185, 4
  %v219 = vadd.f32 %v185, %v218
  %v220 = vrot.slane %v219, 2
  %v221 = vadd.f32 %v219, %v220
  %v222 = vrot.slane %v221, 1
  %v223 = vadd.f32 %v221, %v222
  %v224 = vrot.slane %v186, 4
  %v225 = vadd.f32 %v186, %v224
  %v226 = vrot.slane %v225, 2
  %v227 = vadd.f32 %v225, %v226
  %v228 = vrot.slane %v227, 1
  %v229 = vadd.f32 %v227, %v228
  %v230 = vrot.slane %v187, 4
  %v231 = vadd.f32 %v187, %v230
  %v232 = vrot.slane %v231, 2
  %v233 = vadd.f32 %v231, %v232
  %v234 = vrot.slane %v233, 1
  %v235 = vadd.f32 %v233, %v234
  %v244 = vrot.slane %v199, 6
  %v245 = vrot.slane %v205, 4
  %v246 = vrot.slane %v211, 2
  %v247 = vrot.slane %v223, 6
  %v248 = vrot.slane %v229, 4
  %v249 = vrot.slane %v235, 2
  %v250 = vsel %vm154, %v193, %v244
  %v251 = vsel %vm156, %v245, %v246
  %v252 = vsel %vm158, %v250, %v251
  %v253 = vsel %vm154, %v217, %v247
  %v254 = vsel %vm156, %v248, %v249
  %v255 = vsel %vm158, %v253, %v254
  %v256 = vsel %vm163, %v252, %v252
  %v257 = vsel %vm165, %v252, %v256
  %v258 = vrot.slane %v255, 7
  %v259 = vsel %vm168, %v258, %v257
  %v260 = vsel %vm170, %v258, %v259
  %v261 = vsel %vm172, %v258, %v260
  %v262 = vsel %vm174, %v258, %v261
  %v264 = vadd.f32 %v179, %v262
  %265 = vst [vmem:[#allocation3] sm:$0xff] %v264
  // Predicated region
  $region14: #{signal_to_noise_ratio.1} parent=0 // pred_check
    %p266 = pneg %p53
  $region15: #{signal_to_noise_ratio.1} parent=0 // pred_check_branch
    %268 = sbr.rel (%p266) target = $region17
  $region16: #{signal_to_noise_ratio.1} parent=0 // pred_region
    %v269 = vld [vmem:[#allocation2] sm:$0xff]
    %271 = vst [vmem:[#allocation1] ss:$4 sm:$0xff] %v269
    %v272 = vld.sshfl [vmem:[#allocation1] sm:$0xff pattern:$0x73625140]
    %v273 = vld.sshfl [vmem:[#allocation1 + $0x8] sm:$0xff pattern:$0x73625140]
    %v274 = vld.sshfl [vmem:[#allocation1 + $0x10] sm:$0xff pattern:$0x73625140]
    %v275 = vld.sshfl [vmem:[#allocation1 + $0x18] sm:$0xff pattern:$0x73625140]
    %v280 = vsel %vm154, %v272, 0.0
    %v281 = vsel %vm154, %v273, 0.0
    %v282 = vadd.f32 %v280, %v281
    %v283 = vsel %vm154, %v274, 0.0
    %v284 = vadd.f32 %v282, %v283
    %v285 = vsel %vm154, %v275, 0.0
    %v286 = vadd.f32 %v284, %v285
    %287 = vadd.xlane.f32.xlu0 %v286
    %v288 = vpop.xlane.xlu0 %287
    %vm289 = vcmask 1024
    %290 = vst.msk [vmem:[%s2] sm:$0x3] %vm289, %v288
    %v291 = vld [vmem:[#allocation3] sm:$0xff]
    %293 = vst [vmem:[#allocation1] ss:$4 sm:$0xff] %v291
    %v294 = vld.sshfl [vmem:[#allocation1] sm:$0xff pattern:$0x73625140]
    %v295 = vld.sshfl [vmem:[#allocation1 + $0x8] sm:$0xff pattern:$0x73625140]
    %v296 = vld.sshfl [vmem:[#allocation1 + $0x10] sm:$0xff pattern:$0x73625140]
    %v297 = vld.sshfl [vmem:[#allocation1 + $0x18] sm:$0xff pattern:$0x73625140]
    %v302 = vsel %vm154, %v294, 0.0
    %v303 = vsel %vm154, %v295, 0.0
    %v304 = vadd.f32 %v302, %v303
    %v305 = vsel %vm154, %v296, 0.0
    %v306 = vadd.f32 %v304, %v305
    %v307 = vsel %vm154, %v297, 0.0
    %v308 = vadd.f32 %v306, %v307
    %309 = vadd.xlane.f32.xlu0 %v308
    %v310 = vpop.xlane.xlu0 %309
    %311 = vst.msk [vmem:[%s3] sm:$0x3] %vm289, %v310
  $region17: #{signal_to_noise_ratio.1} parent=0 // pred_fallthru
    _
  // Predicated region
  $region18: #{signal_to_noise_ratio.1} parent=0 // pred_check
    _
  $region19: #{signal_to_noise_ratio.1} parent=0 // pred_check_branch
    %313 = sbr.rel (0) target = $region21
  $region20: #{signal_to_noise_ratio.1} parent=0 // pred_region
    _
  $region21: #{signal_to_noise_ratio.1} parent=0 // pred_fallthru
    _
  // Predicated region
  $region22: #{signal_to_noise_ratio.1} parent=0 // pred_check
    _
  $region23: #{signal_to_noise_ratio.1} parent=0 // pred_check_branch
    %315 = sbr.rel (0) target = $region25
  $region24: #{signal_to_noise_ratio.1} parent=0 // pred_region
    _
  $region25: #{signal_to_noise_ratio.1} parent=0 // pred_fallthru
    _
  // Predicated region
  $region26: #{signal_to_noise_ratio.1} parent=0 // pred_check
    _
  $region27: #{signal_to_noise_ratio.1} parent=0 // pred_check_branch
    %317 = sbr.rel (0) target = $region29
  $region28: #{signal_to_noise_ratio.1} parent=0 // pred_region
    _
  $region29: #{signal_to_noise_ratio.1} parent=0 // pred_fallthru
    _
  // Predicated region
  $region30: #{signal_to_noise_ratio.1} parent=0 // pred_check
    _
  $region31: #{signal_to_noise_ratio.1} parent=0 // pred_check_branch
    %319 = sbr.rel (0) target = $region33
  $region32: #{signal_to_noise_ratio.1} parent=0 // pred_region
    _
  $region33: #{signal_to_noise_ratio.1} parent=0 // pred_fallthru
    _

</llo_original>
